<compile_context>
chip_gen: v5e
topology: v5e:2x2
jax: 0.10.0
libtpu: 0.0.40
codegen_flags: <defaults>
</compile_context>

<pallas_src>
import functools

import jax
import jax.numpy as jnp
from jax.experimental import pallas as pl
from jax.experimental.pallas import tpu as pltpu


def _spatial_attention_kernel(w_ref, b_ref, x_ref, o_ref, *, C, H, W):
    # w_ref : SMEM (18,)  conv weight (1, 2, 3, 3) flattened as [c, ky, kx];
    #         channel-0 (avg) taps are pre-scaled by 1/C in the wrapper.
    # b_ref : SMEM (1,)   conv bias
    # x_ref : VMEM (Nb, C*HW)  lane-dense, channel-flattened input block
    # o_ref : VMEM (Nb, HW)    lane-dense output block (sigmoid mask)
    Nb = x_ref.shape[0]
    HW = H * W

    # ---- hoist all scalar (SMEM) parameter reads once ---------------------
    w = [w_ref[i] for i in range(18)]
    bval = b_ref[0]

    # ---- channel reduction: two independent partial accumulators ----------
    # Channels live on the lane axis as contiguous HW-wide slices, so every
    # read below is an unmasked, tile-aligned vld (HW is a multiple of 128).
    def load(c):
        return x_ref[:, c * HW:(c + 1) * HW].astype(jnp.float32)

    s_acc = [None, None]
    m_acc = [None, None]
    for c in range(C):
        xc = load(c)
        slot = c & 1
        if s_acc[slot] is None:
            s_acc[slot] = xc
            m_acc[slot] = xc
        else:
            s_acc[slot] = s_acc[slot] + xc
            m_acc[slot] = jnp.maximum(m_acc[slot], xc)
    if s_acc[1] is None:
        s, m = s_acc[0], m_acc[0]
    else:
        s = s_acc[0] + s_acc[1]
        m = jnp.maximum(m_acc[0], m_acc[1])
    # (the 1/C of the channel mean is folded into the channel-0 weights)

    # ---- (1, HW) edge masks, built once; sublane-broadcast when applied ---
    idx = jax.lax.broadcasted_iota(jnp.int32, (1, HW), 1)
    if W & (W - 1) == 0:
        col = jnp.bitwise_and(idx, W - 1)      # cheap bitwise mod for pow2 W
    else:
        col = jax.lax.rem(idx, W)
    not_top = idx >= W
    not_bot = idx < (H - 1) * W
    not_left = col >= 1
    not_right = col <= W - 2

    # ---- per-tap weights folded into (1, HW) masked-weight planes ---------
    taps = []   # (shift, weighted_mask_avg, weighted_mask_max) off-centre taps
    for ky in range(3):
        dy = ky - 1
        for kx in range(3):
            dx = kx - 1
            if dy == 0 and dx == 0:
                continue
            conds = []
            if dy == -1:
                conds.append(not_top)
            if dy == 1:
                conds.append(not_bot)
            if dx == -1:
                conds.append(not_left)
            if dx == 1:
                conds.append(not_right)
            mk = conds[0]
            for cnd in conds[1:]:
                mk = mk & cnd
            w_a = w[0 * 9 + ky * 3 + kx]
            w_m = w[1 * 9 + ky * 3 + kx]
            shift = (-(dy * W + dx)) % HW
            taps.append((shift,
                         jnp.where(mk, w_a, 0.0),
                         jnp.where(mk, w_m, 0.0)))

    # ---- 3x3 conv (2 -> 1 channel, padding=1) -----------------------------
    # centre tap (always valid) with raw scalar weights.
    acc = bval + w[4] * s + w[13] * m

    # Shift avg & max planes together (stacked along the sublane axis): one
    # lane shift per tap instead of two.  jnp.roll with a static shift lowers
    # to lane slices + concatenate (XLU on hardware) and also works in
    # interpret mode; out-of-image wrap values are zeroed by the weight masks.
    stacked = jnp.concatenate([s, m], axis=0)            # (2*Nb, HW)
    for shift, mw_a, mw_m in taps:
        rolled = jnp.roll(stacked, shift, axis=1)
        acc = acc + mw_a * rolled[:Nb] + mw_m * rolled[Nb:]

    o_ref[...] = jax.nn.sigmoid(acc).astype(o_ref.dtype)


def _round_up(v, m):
    return ((v + m - 1) // m) * m


def _vmem_capacity_bytes():
    """Physical VMEM per TensorCore; conservative fallback if query fails."""
    try:
        info = pltpu.get_tpu_info()
        cap = getattr(info, "vmem_capacity_bytes", None)
        if cap:
            return int(cap)
    except Exception:
        pass
    return 64 << 20            # v7x-sized (smallest recent generation)


def _pick_block_batch(N, C, HW, vmem_cap):
    """Largest multiple-of-8 batch block that fits a conservative VMEM budget."""
    # f32 bytes per batch element resident in VMEM:
    #   double-buffered x block (C*HW) + out block (HW)
    #   + ~8 live (HW,) intermediate planes (s, m, acc, stacked/rolled temps).
    per_elem = 4 * ((2 * (C + 1) + 8) * HW)
    budget = min(vmem_cap // 2, 48 << 20)      # leave headroom for compiler scratch
    cap = max(8, (budget // per_elem) // 8 * 8)
    n_pad8 = _round_up(N, 8)
    nb = min(cap, n_pad8)
    # Keep >=2 grid steps when the batch is big enough so the "parallel" grid
    # axis can shard across v7x's two TensorCores (harmless on 1-TC chips).
    if nb >= n_pad8 and n_pad8 >= 16:
        nb = _round_up(-(-n_pad8 // 2), 8)
    return nb


def spatial_attention(x, weight, bias, *, block_batch=None):
    """x: (N, C, H, W) float32. weight: (1, 2, 3, 3). bias: (1,)."""
    N, C, H, W = x.shape
    HW = H * W

    # Lane-dense, channel-flattened layout (free reshape wrapper-side).
    x_flat = jnp.asarray(x, jnp.float32).reshape(N, C * HW)

    # Fold the mean's 1/C into the channel-0 conv weights; kernel uses a raw sum.
    w = jnp.asarray(weight, jnp.float32)
    w = w.at[:, 0, :, :].multiply(1.0 / C)
    w_flat = w.reshape(-1)                                 # (18,)  [c, ky, kx]
    b_flat = jnp.asarray(bias, jnp.float32).reshape(-1)    # (1,)

    vmem_cap = _vmem_capacity_bytes()
    nb = block_batch if block_batch is not None else _pick_block_batch(N, C, HW, vmem_cap)
    nb = max(8, _round_up(int(nb), 8))          # sublane-aligned batch block
    n_pad = _round_up(N, nb)
    if n_pad != N:
        x_flat = jnp.pad(x_flat, ((0, n_pad - N), (0, 0)))
    grid = (n_pad // nb,)

    # Scoped-VMEM limit sized from the real footprint (blocks + intermediates),
    # clamped to the physical capacity of this generation.
    vmem_need = 4 * nb * ((2 * (C + 1) + 8) * HW)
    vmem_limit = int(min(vmem_cap, max(vmem_need + (4 << 20), 16 << 20)))

    kernel = functools.partial(_spatial_attention_kernel, C=C, H=H, W=W)

    out_flat = pl.pallas_call(
        kernel,
        out_shape=jax.ShapeDtypeStruct((n_pad, HW), jnp.float32),
        grid=grid,
        in_specs=[
            pl.BlockSpec(memory_space=pltpu.MemorySpace.SMEM),   # weights (18,)
            pl.BlockSpec(memory_space=pltpu.MemorySpace.SMEM),   # bias (1,)
            pl.BlockSpec((nb, C * HW), lambda n: (n, 0)),        # x block
        ],
        out_specs=pl.BlockSpec((nb, HW), lambda n: (n, 0)),
        compiler_params=pltpu.CompilerParams(
            dimension_semantics=("parallel",),
            vmem_limit_bytes=vmem_limit),
    )(w_flat, b_flat, x_flat)

    return out_flat[:N].reshape(N, 1, H, W)


def _reference(x, weight, bias):
    # Pure-JAX reference mirroring the PyTorch forward.
    avg_out = jnp.mean(x, axis=1, keepdims=True)
    max_out = jnp.max(x, axis=1, keepdims=True)
    feat = jnp.concatenate([avg_out, max_out], axis=1)          # (N, 2, H, W)
    y = jax.lax.conv_general_dilated(
        feat, weight, window_strides=(1, 1), padding=((1, 1), (1, 1)),
        dimension_numbers=("NCHW", "OIHW", "NCHW"))
    return jax.nn.sigmoid(y + bias.reshape(1, 1, 1, 1))


if __name__ == "__main__":
    key = jax.random.PRNGKey(0)
    kx, kw, kb = jax.random.split(key, 3)

    N, C, H, W = 2, 4, 16, 16
    x = jax.random.normal(kx, (N, C, H, W), dtype=jnp.float32)

    # Deterministic conv parameters (PyTorch-style uniform init bound).
    fan_in = 2 * 3 * 3
    bound = 1.0 / (fan_in ** 0.5)
    weight = jax.random.uniform(kw, (1, 2, 3, 3), jnp.float32, -bound, bound)
    bias = jax.random.uniform(kb, (1,), jnp.float32, -bound, bound)

    mask = spatial_attention(x, weight, bias)
    jax.block_until_ready(mask)

    ref = _reference(x, weight, bias)
    assert mask.shape == (N, 1, H, W)
    assert jnp.allclose(mask, ref, atol=1e-5, rtol=1e-5)

    print("KERNEL_OK")
</pallas_src>

<mosaic_0001>
module attributes {stable_mosaic.version = 11 : i64} {
  func.func @_spatial_attention_kernel(%arg0: i32, %arg1: memref<18xf32, #tpu.memory_space<smem>>, %arg2: memref<1xf32, #tpu.memory_space<smem>>, %arg3: memref<8x1024xf32, #tpu.memory_space<vmem>>, %arg4: memref<8x256xf32, #tpu.memory_space<vmem>>) attributes {dimension_semantics = [#tpu.dimension_semantics<parallel>], iteration_bounds = array<i64: 1>, scalar_prefetch = 0 : i64, scratch_operands = 0 : i64, tpu.core_type = #tpu.core_type<tc>, window_params = [{transform_indices = @transform_0, window_bounds = array<i64: 18>}, {transform_indices = @transform_1, window_bounds = array<i64: 1>}, {transform_indices = @transform_2, window_bounds = array<i64: 8, 1024>}, {transform_indices = @transform_3, window_bounds = array<i64: 8, 256>}]} {
    %c0 = arith.constant 0 : index
    %0 = memref.load %arg1[%c0] : memref<18xf32, #tpu.memory_space<smem>>
    %c1 = arith.constant 1 : index
    %1 = memref.load %arg1[%c1] : memref<18xf32, #tpu.memory_space<smem>>
    %c2 = arith.constant 2 : index
    %2 = memref.load %arg1[%c2] : memref<18xf32, #tpu.memory_space<smem>>
    %c3 = arith.constant 3 : index
    %3 = memref.load %arg1[%c3] : memref<18xf32, #tpu.memory_space<smem>>
    %c4 = arith.constant 4 : index
    %4 = memref.load %arg1[%c4] : memref<18xf32, #tpu.memory_space<smem>>
    %c5 = arith.constant 5 : index
    %5 = memref.load %arg1[%c5] : memref<18xf32, #tpu.memory_space<smem>>
    %c6 = arith.constant 6 : index
    %6 = memref.load %arg1[%c6] : memref<18xf32, #tpu.memory_space<smem>>
    %c7 = arith.constant 7 : index
    %7 = memref.load %arg1[%c7] : memref<18xf32, #tpu.memory_space<smem>>
    %c8 = arith.constant 8 : index
    %8 = memref.load %arg1[%c8] : memref<18xf32, #tpu.memory_space<smem>>
    %c9 = arith.constant 9 : index
    %9 = memref.load %arg1[%c9] : memref<18xf32, #tpu.memory_space<smem>>
    %c10 = arith.constant 10 : index
    %10 = memref.load %arg1[%c10] : memref<18xf32, #tpu.memory_space<smem>>
    %c11 = arith.constant 11 : index
    %11 = memref.load %arg1[%c11] : memref<18xf32, #tpu.memory_space<smem>>
    %c12 = arith.constant 12 : index
    %12 = memref.load %arg1[%c12] : memref<18xf32, #tpu.memory_space<smem>>
    %c13 = arith.constant 13 : index
    %13 = memref.load %arg1[%c13] : memref<18xf32, #tpu.memory_space<smem>>
    %c14 = arith.constant 14 : index
    %14 = memref.load %arg1[%c14] : memref<18xf32, #tpu.memory_space<smem>>
    %c15 = arith.constant 15 : index
    %15 = memref.load %arg1[%c15] : memref<18xf32, #tpu.memory_space<smem>>
    %c16 = arith.constant 16 : index
    %16 = memref.load %arg1[%c16] : memref<18xf32, #tpu.memory_space<smem>>
    %c17 = arith.constant 17 : index
    %17 = memref.load %arg1[%c17] : memref<18xf32, #tpu.memory_space<smem>>
    %c0_0 = arith.constant 0 : index
    %18 = memref.load %arg2[%c0_0] : memref<1xf32, #tpu.memory_space<smem>>
    %c0_1 = arith.constant 0 : index
    %c0_2 = arith.constant 0 : index
    %19 = vector.load %arg3[%c0_1, %c0_2] : memref<8x1024xf32, #tpu.memory_space<vmem>>, vector<8x256xf32>
    %c0_3 = arith.constant 0 : index
    %c256 = arith.constant 256 : index
    %20 = vector.load %arg3[%c0_3, %c256] : memref<8x1024xf32, #tpu.memory_space<vmem>>, vector<8x256xf32>
    %c0_4 = arith.constant 0 : index
    %c512 = arith.constant 512 : index
    %21 = vector.load %arg3[%c0_4, %c512] : memref<8x1024xf32, #tpu.memory_space<vmem>>, vector<8x256xf32>
    %22 = arith.addf %19, %21 : vector<8x256xf32>
    %23 = arith.maximumf %19, %21 : vector<8x256xf32>
    %c0_5 = arith.constant 0 : index
    %c768 = arith.constant 768 : index
    %24 = vector.load %arg3[%c0_5, %c768] : memref<8x1024xf32, #tpu.memory_space<vmem>>, vector<8x256xf32>
    %25 = arith.addf %20, %24 : vector<8x256xf32>
    %26 = arith.maximumf %20, %24 : vector<8x256xf32>
    %27 = arith.addf %22, %25 : vector<8x256xf32>
    %28 = arith.maximumf %23, %26 : vector<8x256xf32>
    %29 = tpu.iota {dimensions = array<i32: 1>} : vector<1x256xi32>
    %c15_i32 = arith.constant 15 : i32
    %30 = vector.broadcast %c15_i32 : i32 to vector<1x256xi32>
    %31 = arith.andi %29, %30 : vector<1x256xi32>
    %c16_i32 = arith.constant 16 : i32
    %32 = vector.broadcast %c16_i32 : i32 to vector<1x256xi32>
    %33 = arith.cmpi sge, %29, %32 : vector<1x256xi32>
    %c240_i32 = arith.constant 240 : i32
    %34 = vector.broadcast %c240_i32 : i32 to vector<1x256xi32>
    %35 = arith.cmpi slt, %29, %34 : vector<1x256xi32>
    %c1_i32 = arith.constant 1 : i32
    %36 = vector.broadcast %c1_i32 : i32 to vector<1x256xi32>
    %37 = arith.cmpi sge, %31, %36 : vector<1x256xi32>
    %c14_i32 = arith.constant 14 : i32
    %38 = vector.broadcast %c14_i32 : i32 to vector<1x256xi32>
    %39 = arith.cmpi sle, %31, %38 : vector<1x256xi32>
    %40 = arith.andi %33, %37 : vector<1x256xi1>
    %cst = arith.constant 0.000000e+00 : f32
    %41 = vector.broadcast %0 : f32 to vector<1x256xf32>
    %42 = vector.broadcast %cst : f32 to vector<1x256xf32>
    %43 = arith.select %40, %41, %42 : vector<1x256xi1>, vector<1x256xf32>
    %cst_6 = arith.constant 0.000000e+00 : f32
    %44 = vector.broadcast %9 : f32 to vector<1x256xf32>
    %45 = vector.broadcast %cst_6 : f32 to vector<1x256xf32>
    %46 = arith.select %40, %44, %45 : vector<1x256xi1>, vector<1x256xf32>
    %cst_7 = arith.constant 0.000000e+00 : f32
    %47 = vector.broadcast %1 : f32 to vector<1x256xf32>
    %48 = vector.broadcast %cst_7 : f32 to vector<1x256xf32>
    %49 = arith.select %33, %47, %48 : vector<1x256xi1>, vector<1x256xf32>
    %cst_8 = arith.constant 0.000000e+00 : f32
    %50 = vector.broadcast %10 : f32 to vector<1x256xf32>
    %51 = vector.broadcast %cst_8 : f32 to vector<1x256xf32>
    %52 = arith.select %33, %50, %51 : vector<1x256xi1>, vector<1x256xf32>
    %53 = arith.andi %33, %39 : vector<1x256xi1>
    %cst_9 = arith.constant 0.000000e+00 : f32
    %54 = vector.broadcast %2 : f32 to vector<1x256xf32>
    %55 = vector.broadcast %cst_9 : f32 to vector<1x256xf32>
    %56 = arith.select %53, %54, %55 : vector<1x256xi1>, vector<1x256xf32>
    %cst_10 = arith.constant 0.000000e+00 : f32
    %57 = vector.broadcast %11 : f32 to vector<1x256xf32>
    %58 = vector.broadcast %cst_10 : f32 to vector<1x256xf32>
    %59 = arith.select %53, %57, %58 : vector<1x256xi1>, vector<1x256xf32>
    %cst_11 = arith.constant 0.000000e+00 : f32
    %60 = vector.broadcast %3 : f32 to vector<1x256xf32>
    %61 = vector.broadcast %cst_11 : f32 to vector<1x256xf32>
    %62 = arith.select %37, %60, %61 : vector<1x256xi1>, vector<1x256xf32>
    %cst_12 = arith.constant 0.000000e+00 : f32
    %63 = vector.broadcast %12 : f32 to vector<1x256xf32>
    %64 = vector.broadcast %cst_12 : f32 to vector<1x256xf32>
    %65 = arith.select %37, %63, %64 : vector<1x256xi1>, vector<1x256xf32>
    %cst_13 = arith.constant 0.000000e+00 : f32
    %66 = vector.broadcast %5 : f32 to vector<1x256xf32>
    %67 = vector.broadcast %cst_13 : f32 to vector<1x256xf32>
    %68 = arith.select %39, %66, %67 : vector<1x256xi1>, vector<1x256xf32>
    %cst_14 = arith.constant 0.000000e+00 : f32
    %69 = vector.broadcast %14 : f32 to vector<1x256xf32>
    %70 = vector.broadcast %cst_14 : f32 to vector<1x256xf32>
    %71 = arith.select %39, %69, %70 : vector<1x256xi1>, vector<1x256xf32>
    %72 = arith.andi %35, %37 : vector<1x256xi1>
    %cst_15 = arith.constant 0.000000e+00 : f32
    %73 = vector.broadcast %6 : f32 to vector<1x256xf32>
    %74 = vector.broadcast %cst_15 : f32 to vector<1x256xf32>
    %75 = arith.select %72, %73, %74 : vector<1x256xi1>, vector<1x256xf32>
    %cst_16 = arith.constant 0.000000e+00 : f32
    %76 = vector.broadcast %15 : f32 to vector<1x256xf32>
    %77 = vector.broadcast %cst_16 : f32 to vector<1x256xf32>
    %78 = arith.select %72, %76, %77 : vector<1x256xi1>, vector<1x256xf32>
    %cst_17 = arith.constant 0.000000e+00 : f32
    %79 = vector.broadcast %7 : f32 to vector<1x256xf32>
    %80 = vector.broadcast %cst_17 : f32 to vector<1x256xf32>
    %81 = arith.select %35, %79, %80 : vector<1x256xi1>, vector<1x256xf32>
    %cst_18 = arith.constant 0.000000e+00 : f32
    %82 = vector.broadcast %16 : f32 to vector<1x256xf32>
    %83 = vector.broadcast %cst_18 : f32 to vector<1x256xf32>
    %84 = arith.select %35, %82, %83 : vector<1x256xi1>, vector<1x256xf32>
    %85 = arith.andi %35, %39 : vector<1x256xi1>
    %cst_19 = arith.constant 0.000000e+00 : f32
    %86 = vector.broadcast %8 : f32 to vector<1x256xf32>
    %87 = vector.broadcast %cst_19 : f32 to vector<1x256xf32>
    %88 = arith.select %85, %86, %87 : vector<1x256xi1>, vector<1x256xf32>
    %cst_20 = arith.constant 0.000000e+00 : f32
    %89 = vector.broadcast %17 : f32 to vector<1x256xf32>
    %90 = vector.broadcast %cst_20 : f32 to vector<1x256xf32>
    %91 = arith.select %85, %89, %90 : vector<1x256xi1>, vector<1x256xf32>
    %92 = vector.broadcast %4 : f32 to vector<8x256xf32>
    %93 = arith.mulf %92, %27 : vector<8x256xf32>
    %94 = vector.broadcast %18 : f32 to vector<8x256xf32>
    %95 = arith.addf %94, %93 : vector<8x256xf32>
    %96 = vector.broadcast %13 : f32 to vector<8x256xf32>
    %97 = arith.mulf %96, %28 : vector<8x256xf32>
    %98 = arith.addf %95, %97 : vector<8x256xf32>
    %99 = tpu.concatenate %27, %28 in 0 : vector<8x256xf32>, vector<8x256xf32> -> vector<16x256xf32>
    %100 = vector.extract_strided_slice %99 {offsets = [0, 239], sizes = [16, 17], strides = [1, 1]} : vector<16x256xf32> to vector<16x17xf32>
    %101 = vector.extract_strided_slice %99 {offsets = [0, 0], sizes = [16, 239], strides = [1, 1]} : vector<16x256xf32> to vector<16x239xf32>
    %102 = tpu.concatenate %100, %101 in 1 : vector<16x17xf32>, vector<16x239xf32> -> vector<16x256xf32>
    %103 = vector.extract_strided_slice %102 {offsets = [0, 0], sizes = [8, 256], strides = [1, 1]} : vector<16x256xf32> to vector<8x256xf32>
    %104 = vector.broadcast %43 : vector<1x256xf32> to vector<8x256xf32>
    %105 = arith.mulf %104, %103 : vector<8x256xf32>
    %106 = arith.addf %98, %105 : vector<8x256xf32>
    %107 = vector.extract_strided_slice %102 {offsets = [8, 0], sizes = [8, 256], strides = [1, 1]} : vector<16x256xf32> to vector<8x256xf32>
    %108 = vector.broadcast %46 : vector<1x256xf32> to vector<8x256xf32>
    %109 = arith.mulf %108, %107 : vector<8x256xf32>
    %110 = arith.addf %106, %109 : vector<8x256xf32>
    %111 = vector.extract_strided_slice %99 {offsets = [0, 240], sizes = [16, 16], strides = [1, 1]} : vector<16x256xf32> to vector<16x16xf32>
    %112 = vector.extract_strided_slice %99 {offsets = [0, 0], sizes = [16, 240], strides = [1, 1]} : vector<16x256xf32> to vector<16x240xf32>
    %113 = tpu.concatenate %111, %112 in 1 : vector<16x16xf32>, vector<16x240xf32> -> vector<16x256xf32>
    %114 = vector.extract_strided_slice %113 {offsets = [0, 0], sizes = [8, 256], strides = [1, 1]} : vector<16x256xf32> to vector<8x256xf32>
    %115 = vector.broadcast %49 : vector<1x256xf32> to vector<8x256xf32>
    %116 = arith.mulf %115, %114 : vector<8x256xf32>
    %117 = arith.addf %110, %116 : vector<8x256xf32>
    %118 = vector.extract_strided_slice %113 {offsets = [8, 0], sizes = [8, 256], strides = [1, 1]} : vector<16x256xf32> to vector<8x256xf32>
    %119 = vector.broadcast %52 : vector<1x256xf32> to vector<8x256xf32>
    %120 = arith.mulf %119, %118 : vector<8x256xf32>
    %121 = arith.addf %117, %120 : vector<8x256xf32>
    %122 = vector.extract_strided_slice %99 {offsets = [0, 241], sizes = [16, 15], strides = [1, 1]} : vector<16x256xf32> to vector<16x15xf32>
    %123 = vector.extract_strided_slice %99 {offsets = [0, 0], sizes = [16, 241], strides = [1, 1]} : vector<16x256xf32> to vector<16x241xf32>
    %124 = tpu.concatenate %122, %123 in 1 : vector<16x15xf32>, vector<16x241xf32> -> vector<16x256xf32>
    %125 = vector.extract_strided_slice %124 {offsets = [0, 0], sizes = [8, 256], strides = [1, 1]} : vector<16x256xf32> to vector<8x256xf32>
    %126 = vector.broadcast %56 : vector<1x256xf32> to vector<8x256xf32>
    %127 = arith.mulf %126, %125 : vector<8x256xf32>
    %128 = arith.addf %121, %127 : vector<8x256xf32>
    %129 = vector.extract_strided_slice %124 {offsets = [8, 0], sizes = [8, 256], strides = [1, 1]} : vector<16x256xf32> to vector<8x256xf32>
    %130 = vector.broadcast %59 : vector<1x256xf32> to vector<8x256xf32>
    %131 = arith.mulf %130, %129 : vector<8x256xf32>
    %132 = arith.addf %128, %131 : vector<8x256xf32>
    %133 = vector.extract_strided_slice %99 {offsets = [0, 255], sizes = [16, 1], strides = [1, 1]} : vector<16x256xf32> to vector<16x1xf32>
    %134 = vector.extract_strided_slice %99 {offsets = [0, 0], sizes = [16, 255], strides = [1, 1]} : vector<16x256xf32> to vector<16x255xf32>
    %135 = tpu.concatenate %133, %134 in 1 : vector<16x1xf32>, vector<16x255xf32> -> vector<16x256xf32>
    %136 = vector.extract_strided_slice %135 {offsets = [0, 0], sizes = [8, 256], strides = [1, 1]} : vector<16x256xf32> to vector<8x256xf32>
    %137 = vector.broadcast %62 : vector<1x256xf32> to vector<8x256xf32>
    %138 = arith.mulf %137, %136 : vector<8x256xf32>
    %139 = arith.addf %132, %138 : vector<8x256xf32>
    %140 = vector.extract_strided_slice %135 {offsets = [8, 0], sizes = [8, 256], strides = [1, 1]} : vector<16x256xf32> to vector<8x256xf32>
    %141 = vector.broadcast %65 : vector<1x256xf32> to vector<8x256xf32>
    %142 = arith.mulf %141, %140 : vector<8x256xf32>
    %143 = arith.addf %139, %142 : vector<8x256xf32>
    %144 = vector.extract_strided_slice %99 {offsets = [0, 1], sizes = [16, 255], strides = [1, 1]} : vector<16x256xf32> to vector<16x255xf32>
    %145 = vector.extract_strided_slice %99 {offsets = [0, 0], sizes = [16, 1], strides = [1, 1]} : vector<16x256xf32> to vector<16x1xf32>
    %146 = tpu.concatenate %144, %145 in 1 : vector<16x255xf32>, vector<16x1xf32> -> vector<16x256xf32>
    %147 = vector.extract_strided_slice %146 {offsets = [0, 0], sizes = [8, 256], strides = [1, 1]} : vector<16x256xf32> to vector<8x256xf32>
    %148 = vector.broadcast %68 : vector<1x256xf32> to vector<8x256xf32>
    %149 = arith.mulf %148, %147 : vector<8x256xf32>
    %150 = arith.addf %143, %149 : vector<8x256xf32>
    %151 = vector.extract_strided_slice %146 {offsets = [8, 0], sizes = [8, 256], strides = [1, 1]} : vector<16x256xf32> to vector<8x256xf32>
    %152 = vector.broadcast %71 : vector<1x256xf32> to vector<8x256xf32>
    %153 = arith.mulf %152, %151 : vector<8x256xf32>
    %154 = arith.addf %150, %153 : vector<8x256xf32>
    %155 = vector.extract_strided_slice %99 {offsets = [0, 15], sizes = [16, 241], strides = [1, 1]} : vector<16x256xf32> to vector<16x241xf32>
    %156 = vector.extract_strided_slice %99 {offsets = [0, 0], sizes = [16, 15], strides = [1, 1]} : vector<16x256xf32> to vector<16x15xf32>
    %157 = tpu.concatenate %155, %156 in 1 : vector<16x241xf32>, vector<16x15xf32> -> vector<16x256xf32>
    %158 = vector.extract_strided_slice %157 {offsets = [0, 0], sizes = [8, 256], strides = [1, 1]} : vector<16x256xf32> to vector<8x256xf32>
    %159 = vector.broadcast %75 : vector<1x256xf32> to vector<8x256xf32>
    %160 = arith.mulf %159, %158 : vector<8x256xf32>
    %161 = arith.addf %154, %160 : vector<8x256xf32>
    %162 = vector.extract_strided_slice %157 {offsets = [8, 0], sizes = [8, 256], strides = [1, 1]} : vector<16x256xf32> to vector<8x256xf32>
    %163 = vector.broadcast %78 : vector<1x256xf32> to vector<8x256xf32>
    %164 = arith.mulf %163, %162 : vector<8x256xf32>
    %165 = arith.addf %161, %164 : vector<8x256xf32>
    %166 = vector.extract_strided_slice %99 {offsets = [0, 16], sizes = [16, 240], strides = [1, 1]} : vector<16x256xf32> to vector<16x240xf32>
    %167 = vector.extract_strided_slice %99 {offsets = [0, 0], sizes = [16, 16], strides = [1, 1]} : vector<16x256xf32> to vector<16x16xf32>
    %168 = tpu.concatenate %166, %167 in 1 : vector<16x240xf32>, vector<16x16xf32> -> vector<16x256xf32>
    %169 = vector.extract_strided_slice %168 {offsets = [0, 0], sizes = [8, 256], strides = [1, 1]} : vector<16x256xf32> to vector<8x256xf32>
    %170 = vector.broadcast %81 : vector<1x256xf32> to vector<8x256xf32>
    %171 = arith.mulf %170, %169 : vector<8x256xf32>
    %172 = arith.addf %165, %171 : vector<8x256xf32>
    %173 = vector.extract_strided_slice %168 {offsets = [8, 0], sizes = [8, 256], strides = [1, 1]} : vector<16x256xf32> to vector<8x256xf32>
    %174 = vector.broadcast %84 : vector<1x256xf32> to vector<8x256xf32>
    %175 = arith.mulf %174, %173 : vector<8x256xf32>
    %176 = arith.addf %172, %175 : vector<8x256xf32>
    %177 = vector.extract_strided_slice %99 {offsets = [0, 17], sizes = [16, 239], strides = [1, 1]} : vector<16x256xf32> to vector<16x239xf32>
    %178 = vector.extract_strided_slice %99 {offsets = [0, 0], sizes = [16, 17], strides = [1, 1]} : vector<16x256xf32> to vector<16x17xf32>
    %179 = tpu.concatenate %177, %178 in 1 : vector<16x239xf32>, vector<16x17xf32> -> vector<16x256xf32>
    %180 = vector.extract_strided_slice %179 {offsets = [0, 0], sizes = [8, 256], strides = [1, 1]} : vector<16x256xf32> to vector<8x256xf32>
    %181 = vector.broadcast %88 : vector<1x256xf32> to vector<8x256xf32>
    %182 = arith.mulf %181, %180 : vector<8x256xf32>
    %183 = arith.addf %176, %182 : vector<8x256xf32>
    %184 = vector.extract_strided_slice %179 {offsets = [8, 0], sizes = [8, 256], strides = [1, 1]} : vector<16x256xf32> to vector<8x256xf32>
    %185 = vector.broadcast %91 : vector<1x256xf32> to vector<8x256xf32>
    %186 = arith.mulf %185, %184 : vector<8x256xf32>
    %187 = arith.addf %183, %186 : vector<8x256xf32>
    %188 = arith.negf %187 : vector<8x256xf32>
    %189 = math.exp %188 : vector<8x256xf32>
    %cst_21 = arith.constant 1.000000e+00 : f32
    %190 = vector.broadcast %cst_21 : f32 to vector<8x256xf32>
    %191 = arith.addf %190, %189 : vector<8x256xf32>
    %192 = arith.divf %190, %191 : vector<8x256xf32>
    %c0_22 = arith.constant 0 : index
    %c0_23 = arith.constant 0 : index
    %193 = vector.load %arg4[%c0_22, %c0_23] : memref<8x256xf32, #tpu.memory_space<vmem>>, vector<8x256xf32>
    tpu.vector_store %arg4[%c0_22, %c0_23], %192 {strides = array<i32>} : memref<8x256xf32, #tpu.memory_space<vmem>>, vector<8x256xf32>,
    return
  }
  func.func @transform_0(%arg0: i32) -> i32 {
    %c0_i32 = arith.constant 0 : i32
    %c0_i32_0 = arith.constant 0 : i32
    return %c0_i32 : i32
  }
  func.func @transform_1(%arg0: i32) -> i32 {
    %c0_i32 = arith.constant 0 : i32
    %c0_i32_0 = arith.constant 0 : i32
    return %c0_i32 : i32
  }
  func.func @transform_2(%arg0: i32) -> (i32, i32) {
    %c0_i32 = arith.constant 0 : i32
    %c0_i32_0 = arith.constant 0 : i32
    return %arg0, %c0_i32 : i32, i32
  }
  func.func @transform_3(%arg0: i32) -> (i32, i32) {
    %c0_i32 = arith.constant 0 : i32
    %c0_i32_0 = arith.constant 0 : i32
    return %arg0, %c0_i32 : i32, i32
  }
}

</mosaic_0001>

<llo_original>
// kernel: tpu_custom_call.1
$region0: #{tpu_custom_call.1}
  #allocation0 [shape = 'u32[]', space=smem, size = 0x4, offset = 0x4, fixed_abs, tag = 'smem constant byte address 0x4 - core index']
  #allocation1 [shape = 'u32[72,128]{1,0:T(1,128)}', space=vmem, size = 0x9000, scoped, tag = 'internal scratch']
  #allocation2 [shape = 'f32[1]{0:T(128)S(6)}', space=smem, size = 0x200, scoped, tag = 'scoped memory for tpu_custom_call.1']
  %s0 = inlined_call_operand.vmem [shape: f32[18], index: 0, kind: input, shape index: {}]
  %s1 = inlined_call_operand.<no memory space> [shape: f32[1], index: 1, kind: input, shape index: {}]
  %s2 = inlined_call_operand.hbm [shape: f32[8,1024], index: 2, kind: input, shape index: {}]
  %s3 = inlined_call_operand.hbm [shape: f32[8,256], index: 3, kind: output, shape index: {}]
  %s4 = sld [smem:[#allocation0]]
  $region30: #{tpu_custom_call.1} parent=0
    _
  %s6 = ssub.s32 1, %s4
  %s7 = scalar_select 0, %s6, %s4
  %8 = sst [smem:[#allocation2]] %s1
  $region1: #{tpu_custom_call.1} parent=0
    #allocation3 [shape = 'u8[512]{0}', space=smem, size = 0x200, scoped, tag = 'input window, operand 0, single buffered']
    #allocation4 [shape = 's32[1]{0}', space=sflag, size = 0x4, scoped, tag = 'scoped memory for tpu_custom_call.1']
    #allocation5 [shape = 's32[1]{0}', space=sflag, size = 0x4, scoped, tag = 'scoped memory for tpu_custom_call.1']
    #allocation6 [shape = 's32[1]{0}', space=sflag, size = 0x4, scoped, tag = 'scoped memory for tpu_custom_call.1']
    #allocation7 [shape = 'u8[32768]{0}', space=vmem, size = 0x8000, scoped, tag = 'input window, operand 2, single buffered']
    #allocation8 [shape = 'u8[8192]{0}', space=vmem, size = 0x2000, scoped, tag = 'output window, operand 0, single buffered']
    %9 = vsyncpa [#allocation6], 0
    %10 = vsyncpa [#allocation4], 0
    %11 = vsyncpa [#allocation5], 0
    // Predicated region
    $region2: #{tpu_custom_call.1} parent=1 // pred_check
      _
    $region3: #{tpu_custom_call.1} parent=1 // pred_check_branch
      %13 = sbr.rel (0) target = $region5
    $region4: #{tpu_custom_call.1} parent=1 // pred_region
      %15 = vsyncadd [#allocation6], 0
      %s17 = sshll.u32 %s0, 4
      %s18 = int_to_ptr.vmem [resolvable:$true] %s17
      %20 = dma.vmem_to_smem %s18, 16, [#allocation3], [#allocation6]
    $region5: #{tpu_custom_call.1} parent=1 // pred_fallthru
      _
    // Predicated region
    $region6: #{tpu_custom_call.1} parent=1 // pred_check
      _
    $region7: #{tpu_custom_call.1} parent=1 // pred_check_branch
      %22 = sbr.rel (0) target = $region9
    $region8: #{tpu_custom_call.1} parent=1 // pred_region
      _
    $region9: #{tpu_custom_call.1} parent=1 // pred_fallthru
      _
    // Predicated region
    $region10: #{tpu_custom_call.1} parent=1 // pred_check
      _
    $region11: #{tpu_custom_call.1} parent=1 // pred_check_branch
      %24 = sbr.rel (0) target = $region13
    $region12: #{tpu_custom_call.1} parent=1 // pred_region
      %26 = vsyncadd [#allocation4], 0
      %s28 = sshll.u32 %s2, 4
      %s29 = int_to_ptr.hbm [resolvable:$true] %s28
      %s30 = sshll.u32 [#allocation7], 4
      %s31 = int_to_ptr.vmem [resolvable:$true] %s30
      %33 = dma.hbm_to_vmem [thread:$0]  %s29, 1024, %s31, [#allocation4]
    $region13: #{tpu_custom_call.1} parent=1 // pred_fallthru
      _
    // Predicated region
    $region14: #{tpu_custom_call.1} parent=1 // pred_check
      _
    $region15: #{tpu_custom_call.1} parent=1 // pred_check_branch
      %35 = sbr.rel (0) target = $region17
    $region16: #{tpu_custom_call.1} parent=1 // pred_region
      %37 = dma.done [#allocation6], 16
    $region17: #{tpu_custom_call.1} parent=1 // pred_fallthru
      _
    // Predicated region
    $region18: #{tpu_custom_call.1} parent=1 // pred_check
      _
    $region19: #{tpu_custom_call.1} parent=1 // pred_check_branch
      %39 = sbr.rel (0) target = $region21
    $region20: #{tpu_custom_call.1} parent=1 // pred_region
      %41 = dma.done [#allocation4], 1024
    $region21: #{tpu_custom_call.1} parent=1 // pred_fallthru
      _
    %42 = sfence
    %s43 = sld [smem:[#allocation3]]
    %s44 = sld [smem:[#allocation3 + $0x1]]
    %s45 = sld [smem:[#allocation3 + $0x2]]
    %s46 = sld [smem:[#allocation3 + $0x3]]
    %s47 = sld [smem:[#allocation3 + $0x4]]
    %s48 = sld [smem:[#allocation3 + $0x5]]
    %s49 = sld [smem:[#allocation3 + $0x6]]
    %s50 = sld [smem:[#allocation3 + $0x7]]
    %s51 = sld [smem:[#allocation3 + $0x8]]
    %s52 = sld [smem:[#allocation3 + $0x9]]
    %s53 = sld [smem:[#allocation3 + $0xa]]
    %s54 = sld [smem:[#allocation3 + $0xb]]
    %s55 = sld [smem:[#allocation3 + $0xc]]
    %s56 = sld [smem:[#allocation3 + $0xd]]
    %s57 = sld [smem:[#allocation3 + $0xe]]
    %s58 = sld [smem:[#allocation3 + $0xf]]
    %s59 = sld [smem:[#allocation3 + $0x10]]
    %s60 = sld [smem:[#allocation3 + $0x11]]
    %s61 = sld [smem:[#allocation2]]
    %v62 = vld [vmem:[#allocation7] sm:$0xff]
    %v63 = vld [vmem:[#allocation7 + $0x8] sm:$0xff]
    %v64 = vld [vmem:[#allocation7 + $0x10] sm:$0xff]
    %v65 = vld [vmem:[#allocation7 + $0x18] sm:$0xff]
    %v66 = vld [vmem:[#allocation7 + $0x20] sm:$0xff]
    %v67 = vld [vmem:[#allocation7 + $0x28] sm:$0xff]
    %v68 = vadd.f32 %v62, %v66
    %v69 = vadd.f32 %v63, %v67
    %v70 = vmax.f32 %v62, %v66
    %v71 = vmax.f32 %v63, %v67
    %v72 = vld [vmem:[#allocation7 + $0x30] sm:$0xff]
    %v73 = vld [vmem:[#allocation7 + $0x38] sm:$0xff]
    %v74 = vadd.f32 %v64, %v72
    %v75 = vadd.f32 %v65, %v73
    %v76 = vmax.f32 %v64, %v72
    %v77 = vmax.f32 %v65, %v73
    %v78 = vadd.f32 %v68, %v74
    %v79 = vadd.f32 %v69, %v75
    %v80 = vmax.f32 %v70, %v76
    %v81 = vmax.f32 %v71, %v77
    %v82 = vlaneseq
    %v83 = vand.u32 %v82, 127
    %v84 = vadd.s32 %v83, 128
    %v85 = vand.u32 %v83, 15
    %v86 = vand.u32 %v84, 15
    %vm87 = vcmp.ge.s32.totalorder %v83, 16
    %vm88 = vcmp.ge.s32.totalorder %v84, 16
    %vm89 = vcmp.lt.s32.totalorder %v83, 240
    %vm90 = vcmp.lt.s32.totalorder %v84, 240
    %vm91 = vcmp.ge.s32.totalorder %v85, 1
    %vm92 = vcmp.ge.s32.totalorder %v86, 1
    %vm93 = vcmp.le.s32.totalorder %v85, 14
    %vm94 = vcmp.le.s32.totalorder %v86, 14
    %vm95 = vmand %vm87, %vm91
    %vm96 = vmand %vm88, %vm92
    %v97 = vstv %s43
    %v98 = vsel %vm95, %v97, 0.0
    %v99 = vsel %vm96, %v97, 0.0
    %v100 = vstv %s52
    %v101 = vsel %vm95, %v100, 0.0
    %v102 = vsel %vm96, %v100, 0.0
    %v103 = vstv %s44
    %v104 = vsel %vm87, %v103, 0.0
    %v105 = vsel %vm88, %v103, 0.0
    %v106 = vstv %s53
    %v107 = vsel %vm87, %v106, 0.0
    %v108 = vsel %vm88, %v106, 0.0
    %vm109 = vmand %vm87, %vm93
    %vm110 = vmand %vm88, %vm94
    %v111 = vstv %s45
    %v112 = vsel %vm109, %v111, 0.0
    %v113 = vsel %vm110, %v111, 0.0
    %v114 = vstv %s54
    %v115 = vsel %vm109, %v114, 0.0
    %v116 = vsel %vm110, %v114, 0.0
    %v117 = vstv %s46
    %v118 = vsel %vm91, %v117, 0.0
    %v119 = vsel %vm92, %v117, 0.0
    %v120 = vstv %s55
    %v121 = vsel %vm91, %v120, 0.0
    %v122 = vsel %vm92, %v120, 0.0
    %v123 = vstv %s48
    %v124 = vsel %vm93, %v123, 0.0
    %v125 = vsel %vm94, %v123, 0.0
    %v126 = vstv %s57
    %v127 = vsel %vm93, %v126, 0.0
    %v128 = vsel %vm94, %v126, 0.0
    %vm129 = vmand %vm89, %vm91
    %vm130 = vmand %vm90, %vm92
    %v131 = vstv %s49
    %v132 = vsel %vm129, %v131, 0.0
    %v133 = vsel %vm130, %v131, 0.0
    %v134 = vstv %s58
    %v135 = vsel %vm129, %v134, 0.0
    %v136 = vsel %vm130, %v134, 0.0
    %v137 = vstv %s50
    %v138 = vsel %vm89, %v137, 0.0
    %v139 = vsel %vm90, %v137, 0.0
    %v140 = vstv %s59
    %v141 = vsel %vm89, %v140, 0.0
    %v142 = vsel %vm90, %v140, 0.0
    %vm143 = vmand %vm89, %vm93
    %vm144 = vmand %vm90, %vm94
    %v145 = vstv %s51
    %v146 = vsel %vm143, %v145, 0.0
    %v147 = vsel %vm144, %v145, 0.0
    %v148 = vstv %s60
    %v149 = vsel %vm143, %v148, 0.0
    %v150 = vsel %vm144, %v148, 0.0
    %v151 = vstv %s47
    %v152 = vmul.f32 %v151, %v78
    %v153 = vmul.f32 %v151, %v79
    %v154 = vstv %s61
    %v155 = vadd.f32 %v154, %v152
    %v156 = vadd.f32 %v154, %v153
    %v157 = vstv %s56
    %v158 = vmul.f32 %v157, %v80
    %v159 = vmul.f32 %v157, %v81
    %v160 = vadd.f32 %v155, %v158
    %v161 = vadd.f32 %v156, %v159
    %164 = vrot.lane.b32.xlu0 %v79, 17
    %v165 = vpop.permute.xlu0 %164
    %166 = vrot.lane.b32.xlu0 %v81, 17
    %v167 = vpop.permute.xlu0 %166
    %172 = vrot.lane.b32.xlu0 %v78, 17
    %v173 = vpop.permute.xlu0 %172
    %174 = vrot.lane.b32.xlu0 %v80, 17
    %v175 = vpop.permute.xlu0 %174
    %vm176 = vcmask 138240
    %v177 = vsel %vm176, %v173, %v165
    %v178 = vsel %vm176, %v175, %v167
    %v183 = vsel %vm176, %v165, %v173
    %v184 = vsel %vm176, %v167, %v175
    %v185 = vmul.f32 %v98, %v183
    %v186 = vmul.f32 %v99, %v177
    %v187 = vadd.f32 %v160, %v185
    %v188 = vadd.f32 %v161, %v186
    %v189 = vmul.f32 %v101, %v184
    %v190 = vmul.f32 %v102, %v178
    %v191 = vadd.f32 %v187, %v189
    %v192 = vadd.f32 %v188, %v190
    %193 = vrot.lane.b32.xlu0 %v79, 16
    %v194 = vpop.permute.xlu0 %193
    %195 = vrot.lane.b32.xlu0 %v81, 16
    %v196 = vpop.permute.xlu0 %195
    %199 = vrot.lane.b32.xlu0 %v78, 16
    %v200 = vpop.permute.xlu0 %199
    %201 = vrot.lane.b32.xlu0 %v80, 16
    %v202 = vpop.permute.xlu0 %201
    %vm203 = vcmask 130048
    %v204 = vsel %vm203, %v200, %v194
    %v205 = vsel %vm203, %v202, %v196
    %v210 = vsel %vm203, %v194, %v200
    %v211 = vsel %vm203, %v196, %v202
    %v212 = vmul.f32 %v104, %v210
    %v213 = vmul.f32 %v105, %v204
    %v214 = vadd.f32 %v191, %v212
    %v215 = vadd.f32 %v192, %v213
    %v216 = vmul.f32 %v107, %v211
    %v217 = vmul.f32 %v108, %v205
    %v218 = vadd.f32 %v214, %v216
    %v219 = vadd.f32 %v215, %v217
    %220 = vrot.lane.b32.xlu0 %v79, 15
    %v221 = vpop.permute.xlu0 %220
    %222 = vrot.lane.b32.xlu0 %v81, 15
    %v223 = vpop.permute.xlu0 %222
    %226 = vrot.lane.b32.xlu0 %v78, 15
    %v227 = vpop.permute.xlu0 %226
    %228 = vrot.lane.b32.xlu0 %v80, 15
    %v229 = vpop.permute.xlu0 %228
    %vm230 = vcmask 121856
    %v231 = vsel %vm230, %v227, %v221
    %v232 = vsel %vm230, %v229, %v223
    %v237 = vsel %vm230, %v221, %v227
    %v238 = vsel %vm230, %v223, %v229
    %v239 = vmul.f32 %v112, %v237
    %v240 = vmul.f32 %v113, %v231
    %v241 = vadd.f32 %v218, %v239
    %v242 = vadd.f32 %v219, %v240
    %v243 = vmul.f32 %v115, %v238
    %v244 = vmul.f32 %v116, %v232
    %v245 = vadd.f32 %v241, %v243
    %v246 = vadd.f32 %v242, %v244
    %247 = vrot.lane.b32.xlu0 %v79, 1
    %v248 = vpop.permute.xlu0 %247
    %249 = vrot.lane.b32.xlu0 %v81, 1
    %v250 = vpop.permute.xlu0 %249
    %253 = vrot.lane.b32.xlu0 %v78, 1
    %v254 = vpop.permute.xlu0 %253
    %255 = vrot.lane.b32.xlu0 %v80, 1
    %v256 = vpop.permute.xlu0 %255
    %vm257 = vcmask 7168
    %v258 = vsel %vm257, %v254, %v248
    %v259 = vsel %vm257, %v256, %v250
    %v264 = vsel %vm257, %v248, %v254
    %v265 = vsel %vm257, %v250, %v256
    %v266 = vmul.f32 %v118, %v264
    %v267 = vmul.f32 %v119, %v258
    %v268 = vadd.f32 %v245, %v266
    %v269 = vadd.f32 %v246, %v267
    %v270 = vmul.f32 %v121, %v265
    %v271 = vmul.f32 %v122, %v259
    %v272 = vadd.f32 %v268, %v270
    %v273 = vadd.f32 %v269, %v271
    %274 = vrot.lane.b32.xlu0 %v78, 127
    %v275 = vpop.permute.xlu0 %274
    %276 = vrot.lane.b32.xlu0 %v79, 127
    %v277 = vpop.permute.xlu0 %276
    %278 = vrot.lane.b32.xlu0 %v80, 127
    %v279 = vpop.permute.xlu0 %278
    %280 = vrot.lane.b32.xlu0 %v81, 127
    %v281 = vpop.permute.xlu0 %280
    %vm282 = vcmask 1039360
    %v283 = vsel %vm282, %v275, %v277
    %v284 = vsel %vm282, %v279, %v281
    %v291 = vsel %vm282, %v277, %v275
    %v292 = vsel %vm282, %v281, %v279
    %v293 = vmul.f32 %v124, %v283
    %v294 = vmul.f32 %v125, %v291
    %v295 = vadd.f32 %v272, %v293
    %v296 = vadd.f32 %v273, %v294
    %v297 = vmul.f32 %v127, %v284
    %v298 = vmul.f32 %v128, %v292
    %v299 = vadd.f32 %v295, %v297
    %v300 = vadd.f32 %v296, %v298
    %301 = vrot.lane.b32.xlu0 %v78, 113
    %v302 = vpop.permute.xlu0 %301
    %303 = vrot.lane.b32.xlu0 %v79, 113
    %v304 = vpop.permute.xlu0 %303
    %305 = vrot.lane.b32.xlu0 %v80, 113
    %v306 = vpop.permute.xlu0 %305
    %307 = vrot.lane.b32.xlu0 %v81, 113
    %v308 = vpop.permute.xlu0 %307
    %vm309 = vcmask 924672
    %v310 = vsel %vm309, %v302, %v304
    %v311 = vsel %vm309, %v306, %v308
    %v318 = vsel %vm309, %v304, %v302
    %v319 = vsel %vm309, %v308, %v306
    %v320 = vmul.f32 %v132, %v310
    %v321 = vmul.f32 %v133, %v318
    %v322 = vadd.f32 %v299, %v320
    %v323 = vadd.f32 %v300, %v321
    %v324 = vmul.f32 %v135, %v311
    %v325 = vmul.f32 %v136, %v319
    %v326 = vadd.f32 %v322, %v324
    %v327 = vadd.f32 %v323, %v325
    %328 = vrot.lane.b32.xlu0 %v78, 112
    %v329 = vpop.permute.xlu0 %328
    %330 = vrot.lane.b32.xlu0 %v79, 112
    %v331 = vpop.permute.xlu0 %330
    %332 = vrot.lane.b32.xlu0 %v80, 112
    %v333 = vpop.permute.xlu0 %332
    %334 = vrot.lane.b32.xlu0 %v81, 112
    %v335 = vpop.permute.xlu0 %334
    %vm336 = vcmask 916480
    %v337 = vsel %vm336, %v329, %v331
    %v338 = vsel %vm336, %v333, %v335
    %v345 = vsel %vm336, %v331, %v329
    %v346 = vsel %vm336, %v335, %v333
    %v347 = vmul.f32 %v138, %v337
    %v348 = vmul.f32 %v139, %v345
    %v349 = vadd.f32 %v326, %v347
    %v350 = vadd.f32 %v327, %v348
    %v351 = vmul.f32 %v141, %v338
    %v352 = vmul.f32 %v142, %v346
    %v353 = vadd.f32 %v349, %v351
    %v354 = vadd.f32 %v350, %v352
    %355 = vrot.lane.b32.xlu0 %v78, 111
    %v356 = vpop.permute.xlu0 %355
    %357 = vrot.lane.b32.xlu0 %v79, 111
    %v358 = vpop.permute.xlu0 %357
    %359 = vrot.lane.b32.xlu0 %v80, 111
    %v360 = vpop.permute.xlu0 %359
    %361 = vrot.lane.b32.xlu0 %v81, 111
    %v362 = vpop.permute.xlu0 %361
    %vm363 = vcmask 908288
    %v364 = vsel %vm363, %v356, %v358
    %v365 = vsel %vm363, %v360, %v362
    %v372 = vsel %vm363, %v358, %v356
    %v373 = vsel %vm363, %v362, %v360
    %v374 = vmul.f32 %v146, %v364
    %v375 = vmul.f32 %v147, %v372
    %v376 = vadd.f32 %v353, %v374
    %v377 = vadd.f32 %v354, %v375
    %v378 = vmul.f32 %v149, %v365
    %v379 = vmul.f32 %v150, %v373
    %v380 = vadd.f32 %v376, %v378
    %v381 = vadd.f32 %v377, %v379
    %v382 = vxor.u32 %v380, 2147483648
    %v383 = vxor.u32 %v381, 2147483648
    %v384 = vmul.f32 %v382, 1.442695
    %v385 = vpow.pop %v384
    %v386 = vmul.f32 %v383, 1.442695
    %v387 = vpow.pop %v386
    %v388 = vadd.f32 %v385, 1.0
    %v389 = vadd.f32 %v387, 1.0
    %v390 = vrcp.pop %v388
    %v391 = vmul.f32 %v388, %v390
    %v392 = vsub.f32 1.0, %v391
    %v393 = vmul.f32 %v390, %v392
    %v394 = vadd.f32 %v390, %v393
    %vm395 = vweird.f32 %v388
    %vm396 = vweird.f32 %v390
    %vm397 = vmor %vm395, %vm396
    %v398 = vsel %vm397, %v390, %v394
    %v399 = vand.u32 2147483647, %v388
    %vm400 = vcmp.eq.f32.partialorder %v399, 8.507059e+37
    %v401 = vand.u32 %v388, 2147483648
    %v402 = vor.u32 1.1754944e-38, %v401
    %v403 = vsel %vm400, %v402, %v398
    %v404 = vmul.f32 1.0, %v403
    %v405 = vrcp.pop %v389
    %v406 = vmul.f32 %v389, %v405
    %v407 = vsub.f32 1.0, %v406
    %v408 = vmul.f32 %v405, %v407
    %v409 = vadd.f32 %v405, %v408
    %vm410 = vweird.f32 %v389
    %vm411 = vweird.f32 %v405
    %vm412 = vmor %vm410, %vm411
    %v413 = vsel %vm412, %v405, %v409
    %v414 = vand.u32 2147483647, %v389
    %vm415 = vcmp.eq.f32.partialorder %v414, 8.507059e+37
    %v416 = vand.u32 %v389, 2147483648
    %v417 = vor.u32 1.1754944e-38, %v416
    %v418 = vsel %vm415, %v417, %v413
    %v419 = vmul.f32 1.0, %v418
    %420 = vst [vmem:[#allocation8] sm:$0xff] %v404
    %421 = vst [vmem:[#allocation8 + $0x8] sm:$0xff] %v419
    // Predicated region
    $region22: #{tpu_custom_call.1} parent=1 // pred_check
      _
    $region23: #{tpu_custom_call.1} parent=1 // pred_check_branch
      %423 = sbr.rel (0) target = $region25
    $region24: #{tpu_custom_call.1} parent=1 // pred_region
      %425 = vsyncadd [#allocation5], 0
      %s427 = sshll.u32 [#allocation8], 4
      %s428 = int_to_ptr.vmem [resolvable:$true] %s427
      %s429 = sshll.u32 %s3, 4
      %s430 = int_to_ptr.hbm [resolvable:$true] %s429
      %432 = dma.vmem_to_hbm [thread:$0]  %s428, 256, %s430, [#allocation5]
    $region25: #{tpu_custom_call.1} parent=1 // pred_fallthru
      _
    // Predicated region
    $region26: #{tpu_custom_call.1} parent=1 // pred_check
      _
    $region27: #{tpu_custom_call.1} parent=1 // pred_check_branch
      %434 = sbr.rel (0) target = $region29
    $region28: #{tpu_custom_call.1} parent=1 // pred_region
      %436 = dma.done [#allocation5], 256
    $region29: #{tpu_custom_call.1} parent=1 // pred_fallthru
      _
    %437 = vsyncpa [#allocation4], 1
    %438 = vsyncpa [#allocation5], 1
    %439 = vsyncpa [#allocation6], 1

</llo_original>
